<compile_context>
chip_gen: v7x
topology: tpu7x:2x2x1
jax: 0.10.0
libtpu: 0.0.40
codegen_flags: <defaults>
</compile_context>

<pallas_src>
import jax
import jax.numpy as jnp
from jax.experimental import pallas as pl
from jax.experimental.pallas import tpu as pltpu

_LANES = 128
_MAX_BLOCK_ROWS = 1024          # VMEM-safe on v7x (64 MiB physical)
_VMEM_LIMIT_BYTES = 48 * 1024 * 1024


def _round_up(x, m):
    return ((x + m - 1) // m) * m


def double_pendulum_kernel(c_ref, x_ref, o_ref):
    # Dense (bm, 128) component tiles.
    th1 = x_ref[0]
    th2 = x_ref[1]
    dth1 = x_ref[2]
    dth2 = x_ref[3]

    # Pre-folded scalar constants from SMEM (output scales -0.5/l1 and 0.5/l2
    # are already folded into a*/b*).
    a0 = c_ref[0]    # -0.5*m2                  * dth1^2 * sin(2d)
    a1 = c_ref[1]    # -m2*l2/l1                * dth2^2 * sin(d)
    a2 = c_ref[2]    # -g*m2/l1                 * cos(th2) * sin(d)
    a3 = c_ref[3]    # -g*m1/l1                 * sin(th1)
    a4 = c_ref[4]    # -k1/l1                   * dth1
    a5 = c_ref[5]    #  k2/l1                   * dth2 * cos(d)
    b0 = c_ref[6]    #  0.5*m2                  * dth2^2 * sin(2d)
    b1 = c_ref[7]    #  (m1+m2)*l1/l2           * dth1^2 * sin(d)
    b2 = c_ref[8]    #  (m1+m2)*g/l2            * cos(th1) * sin(d)
    b3 = c_ref[9]    #  k1/l2                   * dth1 * cos(d)
    b4 = c_ref[10]   # -(m1+m2)*k2/(m2*l2)      * dth2
    m1 = c_ref[11]
    m2 = c_ref[12]

    # 4 EUP transcendentals total; the angle-difference / double-angle terms
    # are derived on the VPU.
    s1 = jnp.sin(th1)
    c1 = jnp.cos(th1)
    s2 = jnp.sin(th2)
    c2 = jnp.cos(th2)
    sin_d = s1 * c2 - c1 * s2          # sin(th1 - th2)
    cos_d = c1 * c2 + s1 * s2          # cos(th1 - th2)
    sin_2d = 2.0 * sin_d * cos_d       # sin(2*(th1 - th2))
    sd2 = sin_d * sin_d

    dth1_sq = dth1 * dth1
    dth2_sq = dth2 * dth2

    num1 = (a0 * dth1_sq * sin_2d
            + a1 * dth2_sq * sin_d
            + a2 * c2 * sin_d
            + a3 * s1
            + a4 * dth1
            + a5 * dth2 * cos_d)
    num2 = (b0 * dth2_sq * sin_2d
            + b1 * dth1_sq * sin_d
            + b2 * c1 * sin_d
            + b3 * dth1 * cos_d
            + b4 * dth2)

    # Shared reciprocal of the common denominator: EUP approx + one Newton
    # refinement (rel. err ~1e-7, well inside the rtol=1e-4 margin).
    den = m1 + m2 * sd2
    inv0 = pl.reciprocal(den, approx=True)
    inv = inv0 * (2.0 - den * inv0)

    o_ref[0] = dth1
    o_ref[1] = dth2
    o_ref[2] = num1 * inv
    o_ref[3] = num2 * inv


def double_pendulum_pallas(t, x, params, *, block_rows=1024):
    """Evaluate the double-pendulum vector field on a batch of states.

    x: (4, N) float32 — rows are [th1, th2, dth1, dth2].
    params: (7,) float32 — [l1, l2, m1, m2, g, k1, k2].
    Returns (4, N) float32, same semantics as the PyTorch DoublePendulum.
    """
    del t  # autonomous system; kept for API parity
    x = jnp.asarray(x, dtype=jnp.float32)
    params = jnp.asarray(params, dtype=jnp.float32)
    N = x.shape[1]

    # Sublane rows per component after reshaping batch to (M, 128).
    M = pl.cdiv(N, _LANES)
    block_rows = min(block_rows, _MAX_BLOCK_ROWS)

    if M < 16:
        # Tiny batch: single full-extent block (exempt from (8,128) rule).
        bm = M
        grid_m = 1
    else:
        # Always >= 2 grid steps so the pipeline overlaps DMA with compute and
        # both v7x TensorCores get work. Pick grid_m first, then round bm up
        # to a multiple of 8 so padding stays < 8*grid_m rows.
        grid_m = max(2, pl.cdiv(M, block_rows))
        bm = min(_round_up(pl.cdiv(M, grid_m), 8), _MAX_BLOCK_ROWS)
        grid_m = max(2, pl.cdiv(M, bm))

    Mp = grid_m * bm
    Np = Mp * _LANES
    if Np != N:
        x = jnp.pad(x, ((0, 0), (0, Np - N)))
    x3 = x.reshape(4, Mp, _LANES)

    l1, l2, m1, m2, g, k1, k2 = params
    consts = jnp.stack([
        -0.5 * m2,                        # 0: a0
        -m2 * l2 / l1,                    # 1: a1
        -g * m2 / l1,                     # 2: a2
        -g * m1 / l1,                     # 3: a3
        -k1 / l1,                         # 4: a4
        k2 / l1,                          # 5: a5
        0.5 * m2,                         # 6: b0
        (m1 + m2) * l1 / l2,              # 7: b1
        (m1 + m2) * g / l2,               # 8: b2
        k1 / l2,                          # 9: b3
        -(m1 + m2) * k2 / (m2 * l2),      # 10: b4
        m1,                               # 11
        m2,                               # 12
    ]).astype(jnp.float32)

    # Per block at bm=1024: I/O = 2 * 4*1024*128*4B = 4 MiB, double-buffered
    # = 8 MiB, plus ~15-20 materialized block-sized f32 temporaries ~10 MiB
    # -> ~18-20 MiB.  48 MiB scoped VMEM gives headroom on every generation
    # (v5e scoped default is only 16 MiB; v7x physical is 64 MiB).
    out3 = pl.pallas_call(
        double_pendulum_kernel,
        out_shape=jax.ShapeDtypeStruct((4, Mp, _LANES), jnp.float32),
        grid=(grid_m,),
        in_specs=[
            pl.BlockSpec(memory_space=pltpu.MemorySpace.SMEM),       # consts
            pl.BlockSpec((4, bm, _LANES), lambda i: (0, i, 0)),      # x tiles
        ],
        out_specs=pl.BlockSpec((4, bm, _LANES), lambda i: (0, i, 0)),
        compiler_params=pltpu.CompilerParams(
            dimension_semantics=("parallel",),
            vmem_limit_bytes=_VMEM_LIMIT_BYTES),
    )(consts, x3)

    out = out3.reshape(4, Np)
    if Np != N:
        out = out[:, :N]
    return out


def double_pendulum_ref(t, x, params):
    # Pure-JAX reference mirroring the PyTorch DoublePendulum exactly.
    del t
    th1, th2, dth1, dth2 = x
    l1, l2, m1, m2, g, k1, k2 = params
    delth = th1 - th2
    alpha = k1 * dth1
    beta = k2 * dth2
    gamma1 = 2.0 * alpha - 2.0 * beta * jnp.cos(delth)
    gamma2 = 2.0 * alpha * jnp.cos(delth) - 2.0 * (m1 + m2) * beta / m2
    num1 = (m2 * l1 * dth1 ** 2 * jnp.sin(2.0 * delth)
            + 2.0 * m2 * l2 * dth2 ** 2 * jnp.sin(delth)
            + 2.0 * g * m2 * jnp.cos(th2) * jnp.sin(delth)
            + 2.0 * g * m1 * jnp.sin(th1) + gamma1)
    den1 = -2.0 * l1 * (m1 + m2 * jnp.sin(delth) ** 2)
    num2 = (m2 * l2 * dth2 ** 2 * jnp.sin(2.0 * delth)
            + 2.0 * (m1 + m2) * l1 * dth1 ** 2 * jnp.sin(delth)
            + 2.0 * (m1 + m2) * g * jnp.cos(th1) * jnp.sin(delth) + gamma2)
    den2 = 2.0 * l2 * (m1 + m2 * jnp.sin(delth) ** 2)
    return jnp.stack([dth1, dth2, num1 / den1, num2 / den2], axis=0)


if __name__ == "__main__":
    key = jax.random.PRNGKey(0)
    k0, k1, k2 = jax.random.split(key, 3)
    # Deterministic "module parameters": l1, l2, m1, m2, g, k1, k2
    params = jnp.array([1.0, 0.8, 1.5, 1.0, 9.8, 0.1, 0.05], dtype=jnp.float32)
    t = jnp.float32(0.0)

    # Case 1: tiny single-block path (N = 128, M = 1).
    x_small = jax.random.normal(k0, (4, 128), dtype=jnp.float32)
    out_small = jax.block_until_ready(double_pendulum_pallas(t, x_small, params))
    ref_small = double_pendulum_ref(t, x_small, params)
    assert out_small.shape == (4, 128) and out_small.dtype == jnp.float32
    assert jnp.allclose(out_small, ref_small, rtol=1e-4, atol=1e-5)

    # Case 2: ragged N -> padded, gridded path (N = 2000 -> M = 16,
    # grid_m = 2, bm = 8).
    x_big = jax.random.normal(k1, (4, 2000), dtype=jnp.float32)
    out_big = jax.block_until_ready(double_pendulum_pallas(t, x_big, params))
    ref_big = double_pendulum_ref(t, x_big, params)
    assert out_big.shape == (4, 2000) and out_big.dtype == jnp.float32
    assert jnp.allclose(out_big, ref_big, rtol=1e-4, atol=1e-5)

    # Case 3: exact multiple, multi-block without padding (N = 4096 -> M = 32,
    # grid_m = 2, bm = 16).
    x_mid = jax.random.normal(k2, (4, 4096), dtype=jnp.float32)
    out_mid = jax.block_until_ready(double_pendulum_pallas(t, x_mid, params))
    ref_mid = double_pendulum_ref(t, x_mid, params)
    assert out_mid.shape == (4, 4096) and out_mid.dtype == jnp.float32
    assert jnp.allclose(out_mid, ref_mid, rtol=1e-4, atol=1e-5)

    print("KERNEL_OK")
</pallas_src>

<mosaic_0001>
module attributes {stable_mosaic.version = 11 : i64} {
  func.func @double_pendulum_kernel(%arg0: i32, %arg1: memref<13xf32, #tpu.memory_space<smem>>, %arg2: memref<4x1x128xf32, #tpu.memory_space<vmem>>, %arg3: memref<4x1x128xf32, #tpu.memory_space<vmem>>) attributes {dimension_semantics = [#tpu.dimension_semantics<parallel>], iteration_bounds = array<i64: 1>, scalar_prefetch = 0 : i64, scratch_operands = 0 : i64, tpu.core_type = #tpu.core_type<tc>, window_params = [{transform_indices = @transform_0, window_bounds = array<i64: 13>}, {transform_indices = @transform_1, window_bounds = array<i64: 4, 1, 128>}, {transform_indices = @transform_2, window_bounds = array<i64: 4, 1, 128>}]} {
    %c0 = arith.constant 0 : index
    %c0_0 = arith.constant 0 : index
    %c0_1 = arith.constant 0 : index
    %0 = vector.load %arg2[%c0, %c0_0, %c0_1] : memref<4x1x128xf32, #tpu.memory_space<vmem>>, vector<1x1x128xf32>
    %1 = vector.shape_cast %0 : vector<1x1x128xf32> to vector<1x128xf32>
    %c1 = arith.constant 1 : index
    %c0_2 = arith.constant 0 : index
    %c0_3 = arith.constant 0 : index
    %2 = vector.load %arg2[%c1, %c0_2, %c0_3] : memref<4x1x128xf32, #tpu.memory_space<vmem>>, vector<1x1x128xf32>
    %3 = vector.shape_cast %2 : vector<1x1x128xf32> to vector<1x128xf32>
    %c2 = arith.constant 2 : index
    %c0_4 = arith.constant 0 : index
    %c0_5 = arith.constant 0 : index
    %4 = vector.load %arg2[%c2, %c0_4, %c0_5] : memref<4x1x128xf32, #tpu.memory_space<vmem>>, vector<1x1x128xf32>
    %5 = vector.shape_cast %4 : vector<1x1x128xf32> to vector<1x128xf32>
    %c3 = arith.constant 3 : index
    %c0_6 = arith.constant 0 : index
    %c0_7 = arith.constant 0 : index
    %6 = vector.load %arg2[%c3, %c0_6, %c0_7] : memref<4x1x128xf32, #tpu.memory_space<vmem>>, vector<1x1x128xf32>
    %7 = vector.shape_cast %6 : vector<1x1x128xf32> to vector<1x128xf32>
    %c0_8 = arith.constant 0 : index
    %8 = memref.load %arg1[%c0_8] : memref<13xf32, #tpu.memory_space<smem>>
    %c1_9 = arith.constant 1 : index
    %9 = memref.load %arg1[%c1_9] : memref<13xf32, #tpu.memory_space<smem>>
    %c2_10 = arith.constant 2 : index
    %10 = memref.load %arg1[%c2_10] : memref<13xf32, #tpu.memory_space<smem>>
    %c3_11 = arith.constant 3 : index
    %11 = memref.load %arg1[%c3_11] : memref<13xf32, #tpu.memory_space<smem>>
    %c4 = arith.constant 4 : index
    %12 = memref.load %arg1[%c4] : memref<13xf32, #tpu.memory_space<smem>>
    %c5 = arith.constant 5 : index
    %13 = memref.load %arg1[%c5] : memref<13xf32, #tpu.memory_space<smem>>
    %c6 = arith.constant 6 : index
    %14 = memref.load %arg1[%c6] : memref<13xf32, #tpu.memory_space<smem>>
    %c7 = arith.constant 7 : index
    %15 = memref.load %arg1[%c7] : memref<13xf32, #tpu.memory_space<smem>>
    %c8 = arith.constant 8 : index
    %16 = memref.load %arg1[%c8] : memref<13xf32, #tpu.memory_space<smem>>
    %c9 = arith.constant 9 : index
    %17 = memref.load %arg1[%c9] : memref<13xf32, #tpu.memory_space<smem>>
    %c10 = arith.constant 10 : index
    %18 = memref.load %arg1[%c10] : memref<13xf32, #tpu.memory_space<smem>>
    %c11 = arith.constant 11 : index
    %19 = memref.load %arg1[%c11] : memref<13xf32, #tpu.memory_space<smem>>
    %c12 = arith.constant 12 : index
    %20 = memref.load %arg1[%c12] : memref<13xf32, #tpu.memory_space<smem>>
    %21 = math.sin %1 : vector<1x128xf32>
    %22 = math.cos %1 : vector<1x128xf32>
    %23 = math.sin %3 : vector<1x128xf32>
    %24 = math.cos %3 : vector<1x128xf32>
    %25 = arith.mulf %21, %24 : vector<1x128xf32>
    %26 = arith.mulf %22, %23 : vector<1x128xf32>
    %27 = arith.subf %25, %26 : vector<1x128xf32>
    %28 = arith.mulf %22, %24 : vector<1x128xf32>
    %29 = arith.mulf %21, %23 : vector<1x128xf32>
    %30 = arith.addf %28, %29 : vector<1x128xf32>
    %cst = arith.constant 2.000000e+00 : f32
    %31 = vector.broadcast %cst : f32 to vector<1x128xf32>
    %32 = arith.mulf %31, %27 : vector<1x128xf32>
    %33 = arith.mulf %32, %30 : vector<1x128xf32>
    %34 = arith.mulf %27, %27 : vector<1x128xf32>
    %35 = arith.mulf %5, %5 : vector<1x128xf32>
    %36 = arith.mulf %7, %7 : vector<1x128xf32>
    %37 = vector.broadcast %8 : f32 to vector<1x128xf32>
    %38 = arith.mulf %37, %35 : vector<1x128xf32>
    %39 = arith.mulf %38, %33 : vector<1x128xf32>
    %40 = vector.broadcast %9 : f32 to vector<1x128xf32>
    %41 = arith.mulf %40, %36 : vector<1x128xf32>
    %42 = arith.mulf %41, %27 : vector<1x128xf32>
    %43 = arith.addf %39, %42 : vector<1x128xf32>
    %44 = vector.broadcast %10 : f32 to vector<1x128xf32>
    %45 = arith.mulf %44, %24 : vector<1x128xf32>
    %46 = arith.mulf %45, %27 : vector<1x128xf32>
    %47 = arith.addf %43, %46 : vector<1x128xf32>
    %48 = vector.broadcast %11 : f32 to vector<1x128xf32>
    %49 = arith.mulf %48, %21 : vector<1x128xf32>
    %50 = arith.addf %47, %49 : vector<1x128xf32>
    %51 = vector.broadcast %12 : f32 to vector<1x128xf32>
    %52 = arith.mulf %51, %5 : vector<1x128xf32>
    %53 = arith.addf %50, %52 : vector<1x128xf32>
    %54 = vector.broadcast %13 : f32 to vector<1x128xf32>
    %55 = arith.mulf %54, %7 : vector<1x128xf32>
    %56 = arith.mulf %55, %30 : vector<1x128xf32>
    %57 = arith.addf %53, %56 : vector<1x128xf32>
    %58 = vector.broadcast %14 : f32 to vector<1x128xf32>
    %59 = arith.mulf %58, %36 : vector<1x128xf32>
    %60 = arith.mulf %59, %33 : vector<1x128xf32>
    %61 = vector.broadcast %15 : f32 to vector<1x128xf32>
    %62 = arith.mulf %61, %35 : vector<1x128xf32>
    %63 = arith.mulf %62, %27 : vector<1x128xf32>
    %64 = arith.addf %60, %63 : vector<1x128xf32>
    %65 = vector.broadcast %16 : f32 to vector<1x128xf32>
    %66 = arith.mulf %65, %22 : vector<1x128xf32>
    %67 = arith.mulf %66, %27 : vector<1x128xf32>
    %68 = arith.addf %64, %67 : vector<1x128xf32>
    %69 = vector.broadcast %17 : f32 to vector<1x128xf32>
    %70 = arith.mulf %69, %5 : vector<1x128xf32>
    %71 = arith.mulf %70, %30 : vector<1x128xf32>
    %72 = arith.addf %68, %71 : vector<1x128xf32>
    %73 = vector.broadcast %18 : f32 to vector<1x128xf32>
    %74 = arith.mulf %73, %7 : vector<1x128xf32>
    %75 = arith.addf %72, %74 : vector<1x128xf32>
    %76 = vector.broadcast %20 : f32 to vector<1x128xf32>
    %77 = arith.mulf %76, %34 : vector<1x128xf32>
    %78 = vector.broadcast %19 : f32 to vector<1x128xf32>
    %79 = arith.addf %78, %77 : vector<1x128xf32>
    %80 = tpu.reciprocal %79 {approx = true} : vector<1x128xf32> -> vector<1x128xf32>
    %81 = arith.mulf %79, %80 : vector<1x128xf32>
    %cst_12 = arith.constant 2.000000e+00 : f32
    %82 = vector.broadcast %cst_12 : f32 to vector<1x128xf32>
    %83 = arith.subf %82, %81 : vector<1x128xf32>
    %84 = arith.mulf %80, %83 : vector<1x128xf32>
    %c0_13 = arith.constant 0 : index
    %c0_14 = arith.constant 0 : index
    %c0_15 = arith.constant 0 : index
    %85 = vector.load %arg3[%c0_13, %c0_14, %c0_15] : memref<4x1x128xf32, #tpu.memory_space<vmem>>, vector<1x1x128xf32>
    %86 = vector.shape_cast %85 : vector<1x1x128xf32> to vector<1x128xf32>
    %87 = vector.shape_cast %5 : vector<1x128xf32> to vector<1x1x128xf32>
    tpu.vector_store %arg3[%c0_13, %c0_14, %c0_15], %87 {strides = array<i32>} : memref<4x1x128xf32, #tpu.memory_space<vmem>>, vector<1x1x128xf32>,
    %c1_16 = arith.constant 1 : index
    %c0_17 = arith.constant 0 : index
    %c0_18 = arith.constant 0 : index
    %88 = vector.load %arg3[%c1_16, %c0_17, %c0_18] : memref<4x1x128xf32, #tpu.memory_space<vmem>>, vector<1x1x128xf32>
    %89 = vector.shape_cast %88 : vector<1x1x128xf32> to vector<1x128xf32>
    %90 = vector.shape_cast %7 : vector<1x128xf32> to vector<1x1x128xf32>
    tpu.vector_store %arg3[%c1_16, %c0_17, %c0_18], %90 {strides = array<i32>} : memref<4x1x128xf32, #tpu.memory_space<vmem>>, vector<1x1x128xf32>,
    %91 = arith.mulf %57, %84 : vector<1x128xf32>
    %c2_19 = arith.constant 2 : index
    %c0_20 = arith.constant 0 : index
    %c0_21 = arith.constant 0 : index
    %92 = vector.load %arg3[%c2_19, %c0_20, %c0_21] : memref<4x1x128xf32, #tpu.memory_space<vmem>>, vector<1x1x128xf32>
    %93 = vector.shape_cast %92 : vector<1x1x128xf32> to vector<1x128xf32>
    %94 = vector.shape_cast %91 : vector<1x128xf32> to vector<1x1x128xf32>
    tpu.vector_store %arg3[%c2_19, %c0_20, %c0_21], %94 {strides = array<i32>} : memref<4x1x128xf32, #tpu.memory_space<vmem>>, vector<1x1x128xf32>,
    %95 = arith.mulf %75, %84 : vector<1x128xf32>
    %c3_22 = arith.constant 3 : index
    %c0_23 = arith.constant 0 : index
    %c0_24 = arith.constant 0 : index
    %96 = vector.load %arg3[%c3_22, %c0_23, %c0_24] : memref<4x1x128xf32, #tpu.memory_space<vmem>>, vector<1x1x128xf32>
    %97 = vector.shape_cast %96 : vector<1x1x128xf32> to vector<1x128xf32>
    %98 = vector.shape_cast %95 : vector<1x128xf32> to vector<1x1x128xf32>
    tpu.vector_store %arg3[%c3_22, %c0_23, %c0_24], %98 {strides = array<i32>} : memref<4x1x128xf32, #tpu.memory_space<vmem>>, vector<1x1x128xf32>,
    return
  }
  func.func @transform_0(%arg0: i32) -> i32 {
    %c0_i32 = arith.constant 0 : i32
    %c0_i32_0 = arith.constant 0 : i32
    return %c0_i32 : i32
  }
  func.func @transform_1(%arg0: i32) -> (i32, i32, i32) {
    %c0_i32 = arith.constant 0 : i32
    %c0_i32_0 = arith.constant 0 : i32
    %c0_i32_1 = arith.constant 0 : i32
    return %c0_i32, %arg0, %c0_i32_0 : i32, i32, i32
  }
  func.func @transform_2(%arg0: i32) -> (i32, i32, i32) {
    %c0_i32 = arith.constant 0 : i32
    %c0_i32_0 = arith.constant 0 : i32
    %c0_i32_1 = arith.constant 0 : i32
    return %c0_i32, %arg0, %c0_i32_0 : i32, i32, i32
  }
}

</mosaic_0001>

<llo_original>
// kernel: tpu_custom_call.1
$region0: #{tpu_custom_call.1}
  #allocation0 [shape = 'u32[]', space=smem, size = 0x4, offset = 0x4, fixed_abs, tag = 'smem constant byte address 0x4 - core index']
  #allocation1 [shape = 'u32[144,128]{1,0:T(1,128)}', space=vmem, size = 0x12000, scoped, tag = 'internal scratch']
  %s0 = inlined_call_operand.hbm [shape: f32[13], index: 0, kind: input, shape index: {}]
  %s1 = inlined_call_operand.hbm [shape: f32[4,1,128], index: 1, kind: input, shape index: {}]
  %s2 = inlined_call_operand.hbm [shape: f32[4,1,128], index: 2, kind: output, shape index: {}]
  %s3 = sld [smem:[#allocation0]]
  $region26: #{tpu_custom_call.1} parent=0
    _
  %s5 = ssub.s32 1, %s3
  %s6 = scalar_select 0, %s5, %s3
  $region1: #{tpu_custom_call.1} parent=0
    #allocation2 [shape = 'u8[512]{0}', space=smem, size = 0x200, scoped, tag = 'input window, operand 0, single buffered']
    #allocation3 [shape = 's32[1]{0}', space=sflag, size = 0x4, scoped, tag = 'scoped memory for tpu_custom_call.1']
    #allocation4 [shape = 's32[1]{0}', space=sflag, size = 0x4, scoped, tag = 'scoped memory for tpu_custom_call.1']
    #allocation5 [shape = 's32[1]{0}', space=sflag, size = 0x4, scoped, tag = 'scoped memory for tpu_custom_call.1']
    #allocation6 [shape = 'u8[2048]{0}', space=vmem, size = 0x800, scoped, tag = 'input window, operand 1, single buffered']
    #allocation7 [shape = 'u8[2048]{0}', space=vmem, size = 0x800, scoped, tag = 'output window, operand 0, single buffered']
    %7 = vsyncpa [#allocation5], 0
    %8 = vsyncpa [#allocation3], 0
    %9 = vsyncpa [#allocation4], 0
    // Predicated region
    $region2: #{tpu_custom_call.1} parent=1 // pred_check
      _
    $region3: #{tpu_custom_call.1} parent=1 // pred_check_branch
      %11 = sbr.rel (0) target = $region5
    $region4: #{tpu_custom_call.1} parent=1 // pred_region
      %s13 = ssub.s32 16, 16
      %14 = vsyncadd [#allocation5], %s13
      %17 = dma.hbm_to_smem %s0, 16, [#allocation2], [#allocation5]
    $region5: #{tpu_custom_call.1} parent=1 // pred_fallthru
      _
    // Predicated region
    $region6: #{tpu_custom_call.1} parent=1 // pred_check
      _
    $region7: #{tpu_custom_call.1} parent=1 // pred_check_branch
      %19 = sbr.rel (0) target = $region9
    $region8: #{tpu_custom_call.1} parent=1 // pred_region
      %s21 = ssub.s32 64, 64
      %22 = vsyncadd [#allocation3], %s21
      %s23 = sshll.u32 [#allocation6], 4
      %s24 = int_to_ptr.vmem [resolvable:$true] %s23
      %29 = dma.hbm_to_vmem [thread:$0]  %s1, 64, %s24, [#allocation3], 16, 16, 1
    $region9: #{tpu_custom_call.1} parent=1 // pred_fallthru
      _
    // Predicated region
    $region10: #{tpu_custom_call.1} parent=1 // pred_check
      _
    $region11: #{tpu_custom_call.1} parent=1 // pred_check_branch
      %31 = sbr.rel (0) target = $region13
    $region12: #{tpu_custom_call.1} parent=1 // pred_region
      %32 = dma.done [#allocation5], 16
    $region13: #{tpu_custom_call.1} parent=1 // pred_fallthru
      _
    // Predicated region
    $region14: #{tpu_custom_call.1} parent=1 // pred_check
      _
    $region15: #{tpu_custom_call.1} parent=1 // pred_check_branch
      %34 = sbr.rel (0) target = $region17
    $region16: #{tpu_custom_call.1} parent=1 // pred_region
      %35 = dma.done [#allocation3], 64
    $region17: #{tpu_custom_call.1} parent=1 // pred_fallthru
      _
    %36 = sfence
    %v37 = vld [vmem:[#allocation6] sm:$0x1]
    %s38 = scalar_lea.vmem [#allocation6], 1
    %v39 = vld [vmem:[%s38] sm:$0x1]
    %s40 = scalar_lea.vmem [#allocation6], 2
    %v41 = vld [vmem:[%s40] sm:$0x1]
    %s42 = scalar_lea.vmem [#allocation6], 3
    %v43 = vld [vmem:[%s42] sm:$0x1]
    %s44 = sld [smem:[#allocation2]]
    %s45 = sld [smem:[#allocation2 + $0x1]]
    %s46 = sld [smem:[#allocation2 + $0x2]]
    %s47 = sld [smem:[#allocation2 + $0x3]]
    %s48 = sld [smem:[#allocation2 + $0x4]]
    %s49 = sld [smem:[#allocation2 + $0x5]]
    %s50 = sld [smem:[#allocation2 + $0x6]]
    %s51 = sld [smem:[#allocation2 + $0x7]]
    %s52 = sld [smem:[#allocation2 + $0x8]]
    %s53 = sld [smem:[#allocation2 + $0x9]]
    %s54 = sld [smem:[#allocation2 + $0xa]]
    %s55 = sld [smem:[#allocation2 + $0xb]]
    %s56 = sld [smem:[#allocation2 + $0xc]]
    %v57 = vand.u32 2147483647, %v37
    %vm58 = vcmp.le.f32.partialorder %v57, 0.7853982
    %vm59 = vcmp.lt.s32.totalorder %v37, 0
    %v60 = vand.u32 %v37, 2139095040
    %v61 = vshrl.u32 %v60, 23
    %v62 = vsub.s32 %v61, 127
    %v63 = vand.u32 2147483647, %v37
    %v64 = vand.u32 %v63, 8388607
    %v65 = vor.u32 %v64, 8388608
    %v66 = vsub.s32 0, %v65
    %v67 = vadd.s32 %v62, 1
    %vm68 = vcmp.gt.s32.totalorder %v67, 0
    %v69 = vsel %vm68, %v67, 0
    %v70 = vshrl.u32 %v69, 5
    %v71 = vand.u32 %v69, 31
    %v72 = vsub.s32 32, %v71
    %v73 = vshrl.u32 683565275, %v72
    %v74 = vshll.u32 683565275, %v71
    %v75 = vshrl.u32 2475754826, %v72
    %v76 = vor.u32 %v74, %v75
    %v77 = vshll.u32 2475754826, %v71
    %v78 = vshrl.u32 2131351028, %v72
    %v79 = vor.u32 %v77, %v78
    %v80 = vshll.u32 2131351028, %v71
    %v81 = vshrl.u32 2102212464, %v72
    %v82 = vor.u32 %v80, %v81
    %v83 = vshll.u32 2102212464, %v71
    %v84 = vshrl.u32 920167782, %v72
    %v85 = vor.u32 %v83, %v84
    %v86 = vshll.u32 920167782, %v71
    %v87 = vshrl.u32 1326507024, %v72
    %v88 = vor.u32 %v86, %v87
    %vm89 = vcmp.lt.s32.totalorder %v70, 1
    %vm90 = vcmp.lt.s32.totalorder %v70, 2
    %vm91 = vcmp.lt.s32.totalorder %v70, 3
    %vm92 = vcmp.lt.s32.totalorder %v70, 4
    %v93 = vsel %vm89, %v73, %v76
    %v94 = vsel %vm92, %v82, 2102212464
    %v95 = vsel %vm91, %v79, %v94
    %v96 = vsel %vm90, %v93, %v95
    %v97 = vsel %vm89, %v76, %v79
    %v98 = vsel %vm92, %v85, 920167782
    %v99 = vsel %vm91, %v82, %v98
    %v100 = vsel %vm90, %v97, %v99
    %v101 = vsel %vm89, %v79, %v82
    %v102 = vsel %vm92, %v88, 1326507024
    %v103 = vsel %vm91, %v85, %v102
    %v104 = vsel %vm90, %v101, %v103
    %v105 = vshll.u32 %v65, 8
    %v106 = vmul.u32.u64.compose %v105, %v104
    %v107 = vextract.low.u32 %v106
    %v108 = vextract.high.u32 %v106
    %v109 = vmul.u32.u64.compose %v105, %v100
    %v110 = vextract.low.u32 %v109
    %v111 = vextract.high.u32 %v109
    %v112 = vmul.u32 %v105, %v96
    %v113 = vadd.s32 %v108, %v110
    %vm114 = vc.u32 %v108, %v110
    %v115 = vadd.s32 %v111, 1
    %v116 = vsel %vm114, %v115, %v111
    %v117 = vadd.s32 %v112, %v116
    %v118 = vadd.s32 %v117, 536870912
    %v119 = vshrl.u32 %v118, 30
    %v120 = vshll.u32 %v119, 30
    %v121 = vsub.s32 %v117, %v120
    %vm122 = vcmp.lt.s32.totalorder %v121, 0
    %v123 = vsub.s32 0, %v121
    %v124 = vsel %vm122, %v123, %v121
    %v125 = vclz %v124
    %v126 = vsub.s32 %v125, 2
    %vm127 = vcmp.gt.s32.totalorder 0, %v126
    %v128 = vsel %vm127, 0, %v126
    %v129 = vsub.s32 32, %v128
    %v130 = vshll.u32 %v121, %v128
    %v131 = vshrl.u32 %v113, %v129
    %v132 = vor.u32 %v130, %v131
    %v133 = vsub.s32 4294967266, %v128
    %v134 = vadd.s32 %v133, 127
    %v135 = vshll.u32 %v134, 23
    %v136 = vor.u32 4788187, %v135
    %v137 = vand.u32 2147483647, %v136
    %v139 = vcvt.s32.f32 %v132
    %v140 = vmul.f32 %v139, %v137
    %v141 = vxor.u32 %v140, 2147483648
    %v142 = vsel %vm59, %v141, %v140
    %v143 = vsub.s32 4, %v119
    %v144 = vsel %vm59, %v143, %v119
    %v145 = vsel %vm58, %v37, %v142
    %v146 = vsel %vm58, 0, %v144
    %v147 = vcosq.f32.pop %v145
    %v148 = vsinq.f32.pop %v145
    %vm149 = vweird.f32 %v37
    %v150 = vadd.s32 %v146, 3
    %v151 = vand.u32 %v150, 3
    %vm152 = vcmp.lt.s32.totalorder %v151, 2
    %vm153 = vcmp.eq.s32.totalorder %v151, 0
    %v154 = vxor.u32 %v148, 2147483648
    %v155 = vsel %vm153, %v147, %v154
    %vm156 = vcmp.eq.s32.totalorder %v151, 2
    %v157 = vxor.u32 %v147, 2147483648
    %v158 = vsel %vm156, %v157, %v148
    %v159 = vsel %vm152, %v155, %v158
    %v160 = vsel %vm149, nan, %v159
    %v161 = vand.u32 2147483647, %v37
    %vm162 = vcmp.le.f32.partialorder %v161, 0.7853982
    %vm163 = vcmp.lt.s32.totalorder %v37, 0
    %v164 = vand.u32 %v37, 2139095040
    %v165 = vshrl.u32 %v164, 23
    %v166 = vsub.s32 %v165, 127
    %v167 = vand.u32 2147483647, %v37
    %v168 = vand.u32 %v167, 8388607
    %v169 = vor.u32 %v168, 8388608
    %v170 = vsub.s32 0, %v169
    %v171 = vadd.s32 %v166, 1
    %vm172 = vcmp.gt.s32.totalorder %v171, 0
    %v173 = vsel %vm172, %v171, 0
    %v174 = vshrl.u32 %v173, 5
    %v175 = vand.u32 %v173, 31
    %v176 = vsub.s32 32, %v175
    %v177 = vshrl.u32 683565275, %v176
    %v178 = vshll.u32 683565275, %v175
    %v179 = vshrl.u32 2475754826, %v176
    %v180 = vor.u32 %v178, %v179
    %v181 = vshll.u32 2475754826, %v175
    %v182 = vshrl.u32 2131351028, %v176
    %v183 = vor.u32 %v181, %v182
    %v184 = vshll.u32 2131351028, %v175
    %v185 = vshrl.u32 2102212464, %v176
    %v186 = vor.u32 %v184, %v185
    %v187 = vshll.u32 2102212464, %v175
    %v188 = vshrl.u32 920167782, %v176
    %v189 = vor.u32 %v187, %v188
    %v190 = vshll.u32 920167782, %v175
    %v191 = vshrl.u32 1326507024, %v176
    %v192 = vor.u32 %v190, %v191
    %vm193 = vcmp.lt.s32.totalorder %v174, 1
    %vm194 = vcmp.lt.s32.totalorder %v174, 2
    %vm195 = vcmp.lt.s32.totalorder %v174, 3
    %vm196 = vcmp.lt.s32.totalorder %v174, 4
    %v197 = vsel %vm193, %v177, %v180
    %v198 = vsel %vm196, %v186, 2102212464
    %v199 = vsel %vm195, %v183, %v198
    %v200 = vsel %vm194, %v197, %v199
    %v201 = vsel %vm193, %v180, %v183
    %v202 = vsel %vm196, %v189, 920167782
    %v203 = vsel %vm195, %v186, %v202
    %v204 = vsel %vm194, %v201, %v203
    %v205 = vsel %vm193, %v183, %v186
    %v206 = vsel %vm196, %v192, 1326507024
    %v207 = vsel %vm195, %v189, %v206
    %v208 = vsel %vm194, %v205, %v207
    %v209 = vshll.u32 %v169, 8
    %v210 = vmul.u32.u64.compose %v209, %v208
    %v211 = vextract.low.u32 %v210
    %v212 = vextract.high.u32 %v210
    %v213 = vmul.u32.u64.compose %v209, %v204
    %v214 = vextract.low.u32 %v213
    %v215 = vextract.high.u32 %v213
    %v216 = vmul.u32 %v209, %v200
    %v217 = vadd.s32 %v212, %v214
    %vm218 = vc.u32 %v212, %v214
    %v219 = vadd.s32 %v215, 1
    %v220 = vsel %vm218, %v219, %v215
    %v221 = vadd.s32 %v216, %v220
    %v222 = vadd.s32 %v221, 536870912
    %v223 = vshrl.u32 %v222, 30
    %v224 = vshll.u32 %v223, 30
    %v225 = vsub.s32 %v221, %v224
    %vm226 = vcmp.lt.s32.totalorder %v225, 0
    %v227 = vsub.s32 0, %v225
    %v228 = vsel %vm226, %v227, %v225
    %v229 = vclz %v228
    %v230 = vsub.s32 %v229, 2
    %vm231 = vcmp.gt.s32.totalorder 0, %v230
    %v232 = vsel %vm231, 0, %v230
    %v233 = vsub.s32 32, %v232
    %v234 = vshll.u32 %v225, %v232
    %v235 = vshrl.u32 %v217, %v233
    %v236 = vor.u32 %v234, %v235
    %v237 = vsub.s32 4294967266, %v232
    %v238 = vadd.s32 %v237, 127
    %v239 = vshll.u32 %v238, 23
    %v240 = vor.u32 4788187, %v239
    %v241 = vand.u32 2147483647, %v240
    %v243 = vcvt.s32.f32 %v236
    %v244 = vmul.f32 %v243, %v241
    %v245 = vxor.u32 %v244, 2147483648
    %v246 = vsel %vm163, %v245, %v244
    %v247 = vsub.s32 4, %v223
    %v248 = vsel %vm163, %v247, %v223
    %v249 = vsel %vm162, %v37, %v246
    %v250 = vsel %vm162, 0, %v248
    %v251 = vcosq.f32.pop %v249
    %v252 = vsinq.f32.pop %v249
    %vm253 = vweird.f32 %v37
    %v254 = vand.u32 %v250, 3
    %vm255 = vcmp.lt.s32.totalorder %v254, 2
    %vm256 = vcmp.eq.s32.totalorder %v254, 0
    %v257 = vxor.u32 %v252, 2147483648
    %v258 = vsel %vm256, %v251, %v257
    %vm259 = vcmp.eq.s32.totalorder %v254, 2
    %v260 = vxor.u32 %v251, 2147483648
    %v261 = vsel %vm259, %v260, %v252
    %v262 = vsel %vm255, %v258, %v261
    %v263 = vsel %vm253, nan, %v262
    %v264 = vand.u32 2147483647, %v39
    %vm265 = vcmp.le.f32.partialorder %v264, 0.7853982
    %vm266 = vcmp.lt.s32.totalorder %v39, 0
    %v267 = vand.u32 %v39, 2139095040
    %v268 = vshrl.u32 %v267, 23
    %v269 = vsub.s32 %v268, 127
    %v270 = vand.u32 2147483647, %v39
    %v271 = vand.u32 %v270, 8388607
    %v272 = vor.u32 %v271, 8388608
    %v273 = vsub.s32 0, %v272
    %v274 = vadd.s32 %v269, 1
    %vm275 = vcmp.gt.s32.totalorder %v274, 0
    %v276 = vsel %vm275, %v274, 0
    %v277 = vshrl.u32 %v276, 5
    %v278 = vand.u32 %v276, 31
    %v279 = vsub.s32 32, %v278
    %v280 = vshrl.u32 683565275, %v279
    %v281 = vshll.u32 683565275, %v278
    %v282 = vshrl.u32 2475754826, %v279
    %v283 = vor.u32 %v281, %v282
    %v284 = vshll.u32 2475754826, %v278
    %v285 = vshrl.u32 2131351028, %v279
    %v286 = vor.u32 %v284, %v285
    %v287 = vshll.u32 2131351028, %v278
    %v288 = vshrl.u32 2102212464, %v279
    %v289 = vor.u32 %v287, %v288
    %v290 = vshll.u32 2102212464, %v278
    %v291 = vshrl.u32 920167782, %v279
    %v292 = vor.u32 %v290, %v291
    %v293 = vshll.u32 920167782, %v278
    %v294 = vshrl.u32 1326507024, %v279
    %v295 = vor.u32 %v293, %v294
    %vm296 = vcmp.lt.s32.totalorder %v277, 1
    %vm297 = vcmp.lt.s32.totalorder %v277, 2
    %vm298 = vcmp.lt.s32.totalorder %v277, 3
    %vm299 = vcmp.lt.s32.totalorder %v277, 4
    %v300 = vsel %vm296, %v280, %v283
    %v301 = vsel %vm299, %v289, 2102212464
    %v302 = vsel %vm298, %v286, %v301
    %v303 = vsel %vm297, %v300, %v302
    %v304 = vsel %vm296, %v283, %v286
    %v305 = vsel %vm299, %v292, 920167782
    %v306 = vsel %vm298, %v289, %v305
    %v307 = vsel %vm297, %v304, %v306
    %v308 = vsel %vm296, %v286, %v289
    %v309 = vsel %vm299, %v295, 1326507024
    %v310 = vsel %vm298, %v292, %v309
    %v311 = vsel %vm297, %v308, %v310
    %v312 = vshll.u32 %v272, 8
    %v313 = vmul.u32.u64.compose %v312, %v311
    %v314 = vextract.low.u32 %v313
    %v315 = vextract.high.u32 %v313
    %v316 = vmul.u32.u64.compose %v312, %v307
    %v317 = vextract.low.u32 %v316
    %v318 = vextract.high.u32 %v316
    %v319 = vmul.u32 %v312, %v303
    %v320 = vadd.s32 %v315, %v317
    %vm321 = vc.u32 %v315, %v317
    %v322 = vadd.s32 %v318, 1
    %v323 = vsel %vm321, %v322, %v318
    %v324 = vadd.s32 %v319, %v323
    %v325 = vadd.s32 %v324, 536870912
    %v326 = vshrl.u32 %v325, 30
    %v327 = vshll.u32 %v326, 30
    %v328 = vsub.s32 %v324, %v327
    %vm329 = vcmp.lt.s32.totalorder %v328, 0
    %v330 = vsub.s32 0, %v328
    %v331 = vsel %vm329, %v330, %v328
    %v332 = vclz %v331
    %v333 = vsub.s32 %v332, 2
    %vm334 = vcmp.gt.s32.totalorder 0, %v333
    %v335 = vsel %vm334, 0, %v333
    %v336 = vsub.s32 32, %v335
    %v337 = vshll.u32 %v328, %v335
    %v338 = vshrl.u32 %v320, %v336
    %v339 = vor.u32 %v337, %v338
    %v340 = vsub.s32 4294967266, %v335
    %v341 = vadd.s32 %v340, 127
    %v342 = vshll.u32 %v341, 23
    %v343 = vor.u32 4788187, %v342
    %v344 = vand.u32 2147483647, %v343
    %v346 = vcvt.s32.f32 %v339
    %v347 = vmul.f32 %v346, %v344
    %v348 = vxor.u32 %v347, 2147483648
    %v349 = vsel %vm266, %v348, %v347
    %v350 = vsub.s32 4, %v326
    %v351 = vsel %vm266, %v350, %v326
    %v352 = vsel %vm265, %v39, %v349
    %v353 = vsel %vm265, 0, %v351
    %v354 = vcosq.f32.pop %v352
    %v355 = vsinq.f32.pop %v352
    %vm356 = vweird.f32 %v39
    %v357 = vadd.s32 %v353, 3
    %v358 = vand.u32 %v357, 3
    %vm359 = vcmp.lt.s32.totalorder %v358, 2
    %vm360 = vcmp.eq.s32.totalorder %v358, 0
    %v361 = vxor.u32 %v355, 2147483648
    %v362 = vsel %vm360, %v354, %v361
    %vm363 = vcmp.eq.s32.totalorder %v358, 2
    %v364 = vxor.u32 %v354, 2147483648
    %v365 = vsel %vm363, %v364, %v355
    %v366 = vsel %vm359, %v362, %v365
    %v367 = vsel %vm356, nan, %v366
    %v368 = vand.u32 2147483647, %v39
    %vm369 = vcmp.le.f32.partialorder %v368, 0.7853982
    %vm370 = vcmp.lt.s32.totalorder %v39, 0
    %v371 = vand.u32 %v39, 2139095040
    %v372 = vshrl.u32 %v371, 23
    %v373 = vsub.s32 %v372, 127
    %v374 = vand.u32 2147483647, %v39
    %v375 = vand.u32 %v374, 8388607
    %v376 = vor.u32 %v375, 8388608
    %v377 = vsub.s32 0, %v376
    %v378 = vadd.s32 %v373, 1
    %vm379 = vcmp.gt.s32.totalorder %v378, 0
    %v380 = vsel %vm379, %v378, 0
    %v381 = vshrl.u32 %v380, 5
    %v382 = vand.u32 %v380, 31
    %v383 = vsub.s32 32, %v382
    %v384 = vshrl.u32 683565275, %v383
    %v385 = vshll.u32 683565275, %v382
    %v386 = vshrl.u32 2475754826, %v383
    %v387 = vor.u32 %v385, %v386
    %v388 = vshll.u32 2475754826, %v382
    %v389 = vshrl.u32 2131351028, %v383
    %v390 = vor.u32 %v388, %v389
    %v391 = vshll.u32 2131351028, %v382
    %v392 = vshrl.u32 2102212464, %v383
    %v393 = vor.u32 %v391, %v392
    %v394 = vshll.u32 2102212464, %v382
    %v395 = vshrl.u32 920167782, %v383
    %v396 = vor.u32 %v394, %v395
    %v397 = vshll.u32 920167782, %v382
    %v398 = vshrl.u32 1326507024, %v383
    %v399 = vor.u32 %v397, %v398
    %vm400 = vcmp.lt.s32.totalorder %v381, 1
    %vm401 = vcmp.lt.s32.totalorder %v381, 2
    %vm402 = vcmp.lt.s32.totalorder %v381, 3
    %vm403 = vcmp.lt.s32.totalorder %v381, 4
    %v404 = vsel %vm400, %v384, %v387
    %v405 = vsel %vm403, %v393, 2102212464
    %v406 = vsel %vm402, %v390, %v405
    %v407 = vsel %vm401, %v404, %v406
    %v408 = vsel %vm400, %v387, %v390
    %v409 = vsel %vm403, %v396, 920167782
    %v410 = vsel %vm402, %v393, %v409
    %v411 = vsel %vm401, %v408, %v410
    %v412 = vsel %vm400, %v390, %v393
    %v413 = vsel %vm403, %v399, 1326507024
    %v414 = vsel %vm402, %v396, %v413
    %v415 = vsel %vm401, %v412, %v414
    %v416 = vshll.u32 %v376, 8
    %v417 = vmul.u32.u64.compose %v416, %v415
    %v418 = vextract.low.u32 %v417
    %v419 = vextract.high.u32 %v417
    %v420 = vmul.u32.u64.compose %v416, %v411
    %v421 = vextract.low.u32 %v420
    %v422 = vextract.high.u32 %v420
    %v423 = vmul.u32 %v416, %v407
    %v424 = vadd.s32 %v419, %v421
    %vm425 = vc.u32 %v419, %v421
    %v426 = vadd.s32 %v422, 1
    %v427 = vsel %vm425, %v426, %v422
    %v428 = vadd.s32 %v423, %v427
    %v429 = vadd.s32 %v428, 536870912
    %v430 = vshrl.u32 %v429, 30
    %v431 = vshll.u32 %v430, 30
    %v432 = vsub.s32 %v428, %v431
    %vm433 = vcmp.lt.s32.totalorder %v432, 0
    %v434 = vsub.s32 0, %v432
    %v435 = vsel %vm433, %v434, %v432
    %v436 = vclz %v435
    %v437 = vsub.s32 %v436, 2
    %vm438 = vcmp.gt.s32.totalorder 0, %v437
    %v439 = vsel %vm438, 0, %v437
    %v440 = vsub.s32 32, %v439
    %v441 = vshll.u32 %v432, %v439
    %v442 = vshrl.u32 %v424, %v440
    %v443 = vor.u32 %v441, %v442
    %v444 = vsub.s32 4294967266, %v439
    %v445 = vadd.s32 %v444, 127
    %v446 = vshll.u32 %v445, 23
    %v447 = vor.u32 4788187, %v446
    %v448 = vand.u32 2147483647, %v447
    %v450 = vcvt.s32.f32 %v443
    %v451 = vmul.f32 %v450, %v448
    %v452 = vxor.u32 %v451, 2147483648
    %v453 = vsel %vm370, %v452, %v451
    %v454 = vsub.s32 4, %v430
    %v455 = vsel %vm370, %v454, %v430
    %v456 = vsel %vm369, %v39, %v453
    %v457 = vsel %vm369, 0, %v455
    %v458 = vcosq.f32.pop %v456
    %v459 = vsinq.f32.pop %v456
    %vm460 = vweird.f32 %v39
    %v461 = vand.u32 %v457, 3
    %vm462 = vcmp.lt.s32.totalorder %v461, 2
    %vm463 = vcmp.eq.s32.totalorder %v461, 0
    %v464 = vxor.u32 %v459, 2147483648
    %v465 = vsel %vm463, %v458, %v464
    %vm466 = vcmp.eq.s32.totalorder %v461, 2
    %v467 = vxor.u32 %v458, 2147483648
    %v468 = vsel %vm466, %v467, %v459
    %v469 = vsel %vm462, %v465, %v468
    %v470 = vsel %vm460, nan, %v469
    %v471 = vmul.f32 %v160, %v470
    %v472 = vmul.f32 %v263, %v367
    %v473 = vsub.f32 %v471, %v472
    %v474 = vmul.f32 %v263, %v470
    %v475 = vmul.f32 %v160, %v367
    %v476 = vadd.f32 %v474, %v475
    %v477 = vmul.f32 %v473, 2.0
    %v478 = vmul.f32 %v477, %v476
    %v479 = vmul.f32 %v473, %v473
    %v480 = vmul.f32 %v41, %v41
    %v481 = vmul.f32 %v43, %v43
    %v482 = vstv %s44
    %v483 = vmul.f32 %v482, %v480
    %v484 = vmul.f32 %v483, %v478
    %v485 = vstv %s45
    %v486 = vmul.f32 %v485, %v481
    %v487 = vmul.f32 %v486, %v473
    %v488 = vadd.f32 %v484, %v487
    %v489 = vstv %s46
    %v490 = vmul.f32 %v489, %v470
    %v491 = vmul.f32 %v490, %v473
    %v492 = vadd.f32 %v488, %v491
    %v493 = vstv %s47
    %v494 = vmul.f32 %v493, %v160
    %v495 = vadd.f32 %v492, %v494
    %v496 = vstv %s48
    %v497 = vmul.f32 %v496, %v41
    %v498 = vadd.f32 %v495, %v497
    %v499 = vstv %s49
    %v500 = vmul.f32 %v499, %v43
    %v501 = vmul.f32 %v500, %v476
    %v502 = vadd.f32 %v498, %v501
    %v503 = vstv %s50
    %v504 = vmul.f32 %v503, %v481
    %v505 = vmul.f32 %v504, %v478
    %v506 = vstv %s51
    %v507 = vmul.f32 %v506, %v480
    %v508 = vmul.f32 %v507, %v473
    %v509 = vadd.f32 %v505, %v508
    %v510 = vstv %s52
    %v511 = vmul.f32 %v510, %v263
    %v512 = vmul.f32 %v511, %v473
    %v513 = vadd.f32 %v509, %v512
    %v514 = vstv %s53
    %v515 = vmul.f32 %v514, %v41
    %v516 = vmul.f32 %v515, %v476
    %v517 = vadd.f32 %v513, %v516
    %v518 = vstv %s54
    %v519 = vmul.f32 %v518, %v43
    %v520 = vadd.f32 %v517, %v519
    %v521 = vstv %s56
    %v522 = vmul.f32 %v521, %v479
    %v523 = vstv %s55
    %v524 = vadd.f32 %v523, %v522
    %v525 = vrcp.pop %v524
    %v526 = vmul.f32 %v524, %v525
    %v527 = vsub.f32 2.0, %v526
    %v528 = vmul.f32 %v525, %v527
    %529 = vst [vmem:[#allocation7] sm:$0x1] %v41
    %s530 = scalar_lea.vmem [#allocation7], 1
    %531 = vst [vmem:[%s530] sm:$0x1] %v43
    %v532 = vmul.f32 %v502, %v528
    %s533 = scalar_lea.vmem [#allocation7], 2
    %534 = vst [vmem:[%s533] sm:$0x1] %v532
    %v535 = vmul.f32 %v520, %v528
    %s536 = scalar_lea.vmem [#allocation7], 3
    %537 = vst [vmem:[%s536] sm:$0x1] %v535
    // Predicated region
    $region18: #{tpu_custom_call.1} parent=1 // pred_check
      _
    $region19: #{tpu_custom_call.1} parent=1 // pred_check_branch
      %539 = sbr.rel (0) target = $region21
    $region20: #{tpu_custom_call.1} parent=1 // pred_region
      %s541 = ssub.s32 64, 64
      %542 = vsyncadd [#allocation4], %s541
      %s543 = sshll.u32 [#allocation7], 4
      %s544 = int_to_ptr.vmem [resolvable:$true] %s543
      %549 = dma.vmem_to_hbm [thread:$0]  %s544, 64, %s2, [#allocation4], 16, 16, 1
    $region21: #{tpu_custom_call.1} parent=1 // pred_fallthru
      _
    // Predicated region
    $region22: #{tpu_custom_call.1} parent=1 // pred_check
      _
    $region23: #{tpu_custom_call.1} parent=1 // pred_check_branch
      %551 = sbr.rel (0) target = $region25
    $region24: #{tpu_custom_call.1} parent=1 // pred_region
      %552 = dma.done [#allocation4], 64
    $region25: #{tpu_custom_call.1} parent=1 // pred_fallthru
      _
    %553 = vsyncpa [#allocation3], 1
    %554 = vsyncpa [#allocation4], 1
    %555 = vsyncpa [#allocation5], 1

</llo_original>
